<compile_context>
chip_gen: v7x
topology: tpu7x:2x2x1
jax: 0.10.0
libtpu: 0.0.40
codegen_flags: <defaults>
</compile_context>

<pallas_src>
import math

import jax
import jax.numpy as jnp
from jax.experimental import pallas as pl
from jax.experimental.pallas import tpu as pltpu

_MiB = 1024 * 1024
# Sub-32-bit dtypes pack along sublanes: one vreg holds 8 f32 / 16 bf16 /
# 32 int8 rows.
_SUBLANE_PACK = {1: 32, 2: 16, 4: 8, 8: 8}


def flatten(x: jax.Array) -> jax.Array:
    """Recommended path: row-major (N, ...) -> (N, prod(rest)) is a zero-cost
    metadata reshape in XLA — no Pallas kernel needed."""
    n = x.shape[0]
    feat = 1
    for d in x.shape[1:]:
        feat *= d
    return x.reshape(n, feat)


def _flatten_copy_kernel(x_ref, o_ref):
    # Flatten's only "compute" is data movement: straight VMEM tile copy.
    o_ref[...] = x_ref[...]


def _vmem_capacity_bytes() -> int:
    """Best-effort trace-time VMEM query; conservative (v7x) fallback."""
    try:
        info = pltpu.get_tpu_info()
        for attr in ("vmem_capacity_bytes", "vmem_bytes", "vmem_size_bytes"):
            v = getattr(info, attr, None)
            if isinstance(v, int) and v > 0:
                return v
    except Exception:
        pass
    return 64 * _MiB


def _budgets():
    """(target_block_bytes, scoped-VMEM cap) per TPU generation."""
    vmem = _vmem_capacity_bytes()
    if vmem >= 96 * _MiB:           # v5e / v6e: 128 MiB VMEM per TensorCore
        return 8 * _MiB, 96 * _MiB
    return 4 * _MiB, 48 * _MiB      # v7x: 64 MiB VMEM per TensorCore


def _pick_layout(n: int, feat: int, itemsize: int, target_block_bytes: int):
    """Choose a 2D view (rows, cols) of the flat N*F buffer plus tile sizes
    (tn, tf). rows*cols == n*feat; the view is reachable by a free reshape."""
    total = n * feat
    sub = _SUBLANE_PACK.get(itemsize, 8)

    # --- lane-dense re-slab -------------------------------------------------
    # Largest multiple-of-128 divisor of `total`; the VMEM block budget is the
    # only cap (no fixed lane clamp).
    max_lanes = max(128, (target_block_bytes // (sub * itemsize)) // 128 * 128)
    lanes = 0
    if total % 128 == 0:
        c = min(total, max_lanes)
        c -= c % 128
        while c >= 128:
            if total % c == 0:
                lanes = c
                break
            c -= 128

    if lanes:
        rows, cols = total // lanes, lanes
        tf = cols                       # whole lane-dense width in one block
    else:
        # No multiple-of-128 divisor: keep the natural (N, F) view; cdiv
        # partial edge blocks keep it correct and VMEM-safe for any F.
        rows, cols = n, feat
        if cols <= max_lanes:
            tf = cols                   # full-dim lane tile (always legal)
        else:
            tf = max_lanes              # multiple of 128, partial edge block

    # --- row (sublane) tile sized to the block budget -----------------------
    budget_rows = max(sub, (target_block_bytes // (tf * itemsize)) // sub * sub)
    tn = rows if rows <= budget_rows else budget_rows

    # v7x has 2 TensorCores sharded over "parallel" grid axes: avoid a
    # single-step grid on non-trivial inputs so both cores (and the double
    # buffer) get used.
    if (rows <= budget_rows and pl.cdiv(cols, tf) == 1
            and rows >= 2 * sub and total * itemsize >= 2 * _MiB):
        half = (rows + 1) // 2
        tn = ((half + sub - 1) // sub) * sub   # multiple of sub -> 2 steps

    return rows, cols, tn, tf


def flatten_pallas(x: jax.Array, target_block_bytes: int | None = None) -> jax.Array:
    """Explicit on-device Pallas copy with the semantics of
    `x.view(-1, prod(x.shape[1:]))`. Prefer `flatten(x)` (free reshape) unless
    a materialized, independent copy is required."""
    n = x.shape[0]
    feat = math.prod(x.shape[1:]) if x.ndim > 1 else 1
    total = n * feat
    itemsize = jnp.dtype(x.dtype).itemsize

    default_block, vmem_cap = _budgets()
    if target_block_bytes is None:
        target_block_bytes = default_block

    rows, cols, tn, tf = _pick_layout(n, feat, itemsize, target_block_bytes)
    x2d = x.reshape(rows, cols)                    # zero-cost, row-major
    grid = (pl.cdiv(rows, tn), pl.cdiv(cols, tf))

    block_bytes = tn * tf * itemsize
    # in + out, double-buffered, plus headroom; capped per generation.
    vmem_limit = min(vmem_cap, max(16 * _MiB, 4 * block_bytes + 4 * _MiB))

    out2d = pl.pallas_call(
        _flatten_copy_kernel,
        out_shape=jax.ShapeDtypeStruct((rows, cols), x.dtype),
        grid_spec=pltpu.PrefetchScalarGridSpec(
            num_scalar_prefetch=0,
            grid=grid,
            in_specs=[pl.BlockSpec((tn, tf), lambda i, j: (i, j))],
            out_specs=pl.BlockSpec((tn, tf), lambda i, j: (i, j)),
        ),
        compiler_params=pltpu.CompilerParams(
            dimension_semantics=("parallel", "parallel"),
            vmem_limit_bytes=vmem_limit,
        ),
        # Pure bandwidth-bound copy: one HBM read + one HBM write.
        cost_estimate=pl.CostEstimate(
            flops=0, transcendentals=0, bytes_accessed=2 * total * itemsize),
    )(x2d)

    # Final (N, prod(rest)) shape is again a zero-cost reshape of the copy.
    return out2d.reshape(n, feat)


if __name__ == "__main__":
    key = jax.random.PRNGKey(0)
    # Small NCHW input consistent with how Flatten is used after convs.
    x = jax.random.normal(key, (2, 4, 16, 16), dtype=jnp.float32)

    # Recommended zero-cost path.
    y_fast = flatten(x)

    # Explicit Pallas copy path (exercises the kernel).
    y = flatten_pallas(x)
    y = jax.block_until_ready(y)

    # Reference semantics check: x.view(-1, prod(shape[1:]))
    y_ref = x.reshape(-1, 4 * 16 * 16)
    assert y.shape == (2, 1024), y.shape
    assert y.dtype == x.dtype
    assert jnp.array_equal(y, y_ref)
    assert jnp.array_equal(y_fast, y_ref)

    print("KERNEL_OK")
</pallas_src>

<mosaic_0001>
module attributes {stable_mosaic.version = 11 : i64} {
  func.func @_flatten_copy_kernel(%arg0: i32, %arg1: i32, %arg2: memref<1x2048xf32, #tpu.memory_space<vmem>>, %arg3: memref<1x2048xf32, #tpu.memory_space<vmem>>) attributes {dimension_semantics = [#tpu.dimension_semantics<parallel>, #tpu.dimension_semantics<parallel>], iteration_bounds = array<i64: 1, 1>, scalar_prefetch = 0 : i64, scratch_operands = 0 : i64, tpu.core_type = #tpu.core_type<tc>, window_params = [{transform_indices = @transform_0, window_bounds = array<i64: 1, 2048>}, {transform_indices = @transform_1, window_bounds = array<i64: 1, 2048>}]} {
    %c0 = arith.constant 0 : index
    %c0_0 = arith.constant 0 : index
    %0 = vector.load %arg2[%c0, %c0_0] : memref<1x2048xf32, #tpu.memory_space<vmem>>, vector<1x2048xf32>
    %c0_1 = arith.constant 0 : index
    %c0_2 = arith.constant 0 : index
    %1 = vector.load %arg3[%c0_1, %c0_2] : memref<1x2048xf32, #tpu.memory_space<vmem>>, vector<1x2048xf32>
    tpu.vector_store %arg3[%c0_1, %c0_2], %0 {strides = array<i32>} : memref<1x2048xf32, #tpu.memory_space<vmem>>, vector<1x2048xf32>,
    return
  }
  func.func @transform_0(%arg0: i32, %arg1: i32) -> (i32, i32) {
    %c0_i32 = arith.constant 0 : i32
    return %arg0, %arg1 : i32, i32
  }
  func.func @transform_1(%arg0: i32, %arg1: i32) -> (i32, i32) {
    %c0_i32 = arith.constant 0 : i32
    return %arg0, %arg1 : i32, i32
  }
}

</mosaic_0001>

<llo_original>
// kernel: tpu_custom_call.1
$region0: #{tpu_custom_call.1}
  #allocation0 [shape = 'u32[]', space=smem, size = 0x4, offset = 0x4, fixed_abs, tag = 'smem constant byte address 0x4 - core index']
  #allocation1 [shape = 'u32[144,128]{1,0:T(1,128)}', space=vmem, size = 0x12000, scoped, tag = 'internal scratch']
  %s0 = inlined_call_operand.hbm [shape: f32[1,2048], index: 0, kind: input, shape index: {}]
  %s1 = inlined_call_operand.hbm [shape: f32[1,2048], index: 1, kind: output, shape index: {}]
  %s2 = sld [smem:[#allocation0]]
  $region18: #{tpu_custom_call.1} parent=0
    _
  %s4 = ssub.s32 1, %s2
  %s5 = scalar_select 0, %s4, %s2
  $region1: #{tpu_custom_call.1} parent=0
    #allocation2 [shape = 'u8[8192]{0}', space=vmem, size = 0x2000, scoped, tag = 'input window, operand 0, single buffered']
    #allocation3 [shape = 's32[1]{0}', space=sflag, size = 0x4, scoped, tag = 'scoped memory for tpu_custom_call.1']
    #allocation4 [shape = 's32[1]{0}', space=sflag, size = 0x4, scoped, tag = 'scoped memory for tpu_custom_call.1']
    #allocation5 [shape = 'u8[8192]{0}', space=vmem, size = 0x2000, scoped, tag = 'output window, operand 0, single buffered']
    %6 = vsyncpa [#allocation3], 0
    %7 = vsyncpa [#allocation4], 0
    // Predicated region
    $region2: #{tpu_custom_call.1} parent=1 // pred_check
      _
    $region3: #{tpu_custom_call.1} parent=1 // pred_check_branch
      %9 = sbr.rel (0) target = $region5
    $region4: #{tpu_custom_call.1} parent=1 // pred_region
      %s11 = ssub.s32 256, 256
      %12 = vsyncadd [#allocation3], %s11
      %s14 = sshll.u32 [#allocation2], 4
      %s15 = int_to_ptr.vmem [resolvable:$true] %s14
      %17 = dma.hbm_to_vmem [thread:$0]  %s0, 256, %s15, [#allocation3]
    $region5: #{tpu_custom_call.1} parent=1 // pred_fallthru
      _
    // Predicated region
    $region6: #{tpu_custom_call.1} parent=1 // pred_check
      _
    $region7: #{tpu_custom_call.1} parent=1 // pred_check_branch
      %19 = sbr.rel (0) target = $region9
    $region8: #{tpu_custom_call.1} parent=1 // pred_region
      %20 = dma.done [#allocation3], 256
    $region9: #{tpu_custom_call.1} parent=1 // pred_fallthru
      _
    %v21 = vld [vmem:[#allocation2] sm:$0xff]
    %v22 = vld [vmem:[#allocation2 + $0x8] sm:$0xff]
    %23 = vst [vmem:[#allocation5] sm:$0xff] %v21
    %24 = vst [vmem:[#allocation5 + $0x8] sm:$0xff] %v22
    // Predicated region
    $region10: #{tpu_custom_call.1} parent=1 // pred_check
      _
    $region11: #{tpu_custom_call.1} parent=1 // pred_check_branch
      %26 = sbr.rel (0) target = $region13
    $region12: #{tpu_custom_call.1} parent=1 // pred_region
      %s28 = ssub.s32 256, 256
      %29 = vsyncadd [#allocation4], %s28
      %s31 = sshll.u32 [#allocation5], 4
      %s32 = int_to_ptr.vmem [resolvable:$true] %s31
      %34 = dma.vmem_to_hbm [thread:$0]  %s32, 256, %s1, [#allocation4]
    $region13: #{tpu_custom_call.1} parent=1 // pred_fallthru
      _
    // Predicated region
    $region14: #{tpu_custom_call.1} parent=1 // pred_check
      _
    $region15: #{tpu_custom_call.1} parent=1 // pred_check_branch
      %36 = sbr.rel (0) target = $region17
    $region16: #{tpu_custom_call.1} parent=1 // pred_region
      %37 = dma.done [#allocation4], 256
    $region17: #{tpu_custom_call.1} parent=1 // pred_fallthru
      _
    %38 = vsyncpa [#allocation3], 1
    %39 = vsyncpa [#allocation4], 1

</llo_original>
